<compile_context>
chip_gen: v7x
topology: tpu7x:2x2x1
jax: 0.10.0
libtpu: 0.0.40
codegen_flags: <defaults>
</compile_context>

<pallas_src>
import math

import jax
import jax.numpy as jnp
from jax.experimental import pallas as pl
from jax.experimental.pallas import tpu as pltpu

LANE = 128     # TPU lane width (last-dim tile)
SUBLANE = 8    # f32 sublane width (second-last-dim tile)


def _round_up(x, m):
    return (x + m - 1) // m * m


def _cdiv(a, b):
    return (a + b - 1) // b


def _mlp_kernel(x_ref, w_ref, b_ref, out_ref):
    """Fused 4-layer MLP on one (BT, F_in) batch tile.

    x_ref:   (BT, F_in)    f32   raw activations (cast to bf16 in-kernel)
    w_ref:   (4, 128, 128) bf16  packed, pre-transposed (in, out) weights, zero-padded
    b_ref:   (4, 128)      f32   packed biases, zero-padded
    out_ref: (BT, F_out)   f32   narrow final output (no post-slice pass needed)
    """
    fin = x_ref.shape[-1]
    fout = out_ref.shape[-1]

    x = x_ref[...].astype(jnp.bfloat16)                                  # (BT, fin)

    # fc1 (outer) + ReLU — only the first `fin` input rows of the padded weight matter.
    h = jnp.dot(x, w_ref[0, :fin, :], preferred_element_type=jnp.float32)
    h = jnp.maximum(h + b_ref[0:1, :], 0.0)

    # nested.fc1 + ReLU
    h = jnp.dot(h.astype(jnp.bfloat16), w_ref[1], preferred_element_type=jnp.float32)
    h = jnp.maximum(h + b_ref[1:2, :], 0.0)

    # nested.fc2 + ReLU
    h = jnp.dot(h.astype(jnp.bfloat16), w_ref[2], preferred_element_type=jnp.float32)
    h = jnp.maximum(h + b_ref[2:3, :], 0.0)

    # nested.fc3 (no activation); store only the valid output lanes.
    y = jnp.dot(h.astype(jnp.bfloat16), w_ref[3], preferred_element_type=jnp.float32)
    y = y + b_ref[3:4, :]
    out_ref[...] = y[:, :fout].astype(out_ref.dtype)


def _choose_batch_tiling(B, batch_tile):
    """Pick (B_pad, tile, n_tiles) with tile a multiple of 8 and >=2 tiles when possible."""
    bp0 = _round_up(max(B, 1), SUBLANE)
    n_tiles = _cdiv(bp0, _round_up(batch_tile, SUBLANE))
    if bp0 >= 2 * SUBLANE:          # give v7x's two TensorCores >=1 parallel tile each
        n_tiles = max(n_tiles, 2)
    bt = _round_up(_cdiv(bp0, n_tiles), SUBLANE)
    n_tiles = _cdiv(bp0, bt)
    return n_tiles * bt, bt, n_tiles


def nested_test_module_forward(x, params, *, batch_tile=2048):
    """x: (B, input_features) f32. params: packed/padded slabs from init_params."""
    B, fin = x.shape
    fout = params["out_features"]
    w_slab = params["w_slab"]   # (4, 128, 128) bf16
    b_slab = params["b_slab"]   # (4, 128)      f32

    bp, bt, n_tiles = _choose_batch_tiling(B, batch_tile)
    x_p = x if bp == B else jnp.zeros((bp, fin), x.dtype).at[:B, :].set(x)

    out_p = pl.pallas_call(
        _mlp_kernel,
        out_shape=jax.ShapeDtypeStruct((bp, fout), jnp.float32),
        grid=(n_tiles,),
        in_specs=[
            pl.BlockSpec((bt, fin), lambda i: (i, 0)),            # activation tile (raw f32)
            pl.BlockSpec(w_slab.shape, lambda i: (0, 0, 0)),      # weights: DMA'd once, resident
            pl.BlockSpec(b_slab.shape, lambda i: (0, 0)),         # biases:  DMA'd once, resident
        ],
        out_specs=pl.BlockSpec((bt, fout), lambda i: (i, 0)),     # narrow final output
        compiler_params=pltpu.CompilerParams(
            dimension_semantics=("parallel",),   # shard batch tiles across v7x's 2 TCs
            vmem_limit_bytes=24 << 20,           # fits bt=2048 tiles on v5e/v6e/v7x
        ),
    )(x_p, w_slab, b_slab)

    return out_p if bp == B else out_p[:B, :]


def init_params(key, input_features, output_features):
    """Build packed, lane-padded parameter slabs mirroring the PyTorch module.

    PyTorch nn.Linear stores weight as (out, in); we store the transpose (in, out),
    zero-padded to (128, 128), so the kernel computes x @ W + b directly and padded
    lanes stay exactly zero through the ReLU chain.
    """
    dims = [
        (input_features, input_features),  # fc1 (outer)
        (input_features, 100),             # nested.fc1
        (100, 50),                         # nested.fc2
        (50, output_features),             # nested.fc3
    ]
    w_slab = jnp.zeros((4, LANE, LANE), jnp.float32)
    b_slab = jnp.zeros((4, LANE), jnp.float32)
    for i, (fin, fout) in enumerate(dims):
        key, kw, kb = jax.random.split(key, 3)
        bound = 1.0 / math.sqrt(fin)  # nn.Linear default uniform bound
        w = jax.random.uniform(kw, (fin, fout), jnp.float32, minval=-bound, maxval=bound)
        b = jax.random.uniform(kb, (fout,), jnp.float32, minval=-bound, maxval=bound)
        w_slab = w_slab.at[i, :fin, :fout].set(w)
        b_slab = b_slab.at[i, :fout].set(b)
    return {
        "w_slab": w_slab.astype(jnp.bfloat16),  # bf16 MXU operands
        "b_slab": b_slab,                       # f32 bias added to f32 accumulator
        "out_features": output_features,
    }


def reference_forward(x, params):
    """Pure-JAX reference (also a reasonable XLA fallback for tiny batches)."""
    w, b = params["w_slab"], params["b_slab"]
    fin = x.shape[1]
    h = jnp.dot(x.astype(jnp.bfloat16), w[0, :fin, :], preferred_element_type=jnp.float32)
    h = jnp.maximum(h + b[0][None, :], 0.0)
    for i in (1, 2):
        z = jnp.dot(h.astype(jnp.bfloat16), w[i], preferred_element_type=jnp.float32)
        h = jnp.maximum(z + b[i][None, :], 0.0)
    y = jnp.dot(h.astype(jnp.bfloat16), w[3], preferred_element_type=jnp.float32) + b[3][None, :]
    return y[:, :params["out_features"]]


if __name__ == "__main__":
    batch = 2
    input_features = 32
    output_features = 8

    key = jax.random.PRNGKey(0)
    key, kx = jax.random.split(key)
    x = jax.random.normal(kx, (batch, input_features), dtype=jnp.float32)
    params = init_params(key, input_features, output_features)

    y = nested_test_module_forward(x, params)
    jax.block_until_ready(y)

    y_ref = reference_forward(x, params)
    assert y.shape == (batch, output_features)
    assert jnp.allclose(y, y_ref, atol=1e-3, rtol=1e-3), "mismatch vs JAX reference"

    print("KERNEL_OK")
</pallas_src>

<mosaic_0001>
module attributes {stable_mosaic.version = 11 : i64} {
  func.func @_mlp_kernel(%arg0: i32, %arg1: memref<8x32xf32, #tpu.memory_space<vmem>>, %arg2: memref<4x128x128xbf16, #tpu.memory_space<vmem>>, %arg3: memref<4x128xf32, #tpu.memory_space<vmem>>, %arg4: memref<8x8xf32, #tpu.memory_space<vmem>>) attributes {dimension_semantics = [#tpu.dimension_semantics<parallel>], iteration_bounds = array<i64: 1>, scalar_prefetch = 0 : i64, scratch_operands = 0 : i64, tpu.core_type = #tpu.core_type<tc>, window_params = [{transform_indices = @transform_0, window_bounds = array<i64: 8, 32>}, {pipeline_mode = #tpu.pipeline_mode<synchronous>, transform_indices = @transform_1, window_bounds = array<i64: 4, 128, 128>}, {pipeline_mode = #tpu.pipeline_mode<synchronous>, transform_indices = @transform_2, window_bounds = array<i64: 4, 128>}, {transform_indices = @transform_3, window_bounds = array<i64: 8, 8>}]} {
    %c0 = arith.constant 0 : index
    %c0_0 = arith.constant 0 : index
    %0 = vector.load %arg1[%c0, %c0_0] : memref<8x32xf32, #tpu.memory_space<vmem>>, vector<8x32xf32>
    %1 = arith.truncf %0 : vector<8x32xf32> to vector<8x32xbf16>
    %c0_1 = arith.constant 0 : index
    %c0_2 = arith.constant 0 : index
    %c0_3 = arith.constant 0 : index
    %2 = vector.load %arg2[%c0_1, %c0_2, %c0_3] : memref<4x128x128xbf16, #tpu.memory_space<vmem>>, vector<1x32x128xbf16>
    %3 = vector.shape_cast %2 : vector<1x32x128xbf16> to vector<32x128xbf16>
    %cst = arith.constant dense<0.000000e+00> : vector<8x128xf32>
    %4 = tpu.matmul %1, %3, %cst {dimension_numbers = #tpu.dot_dimension_numbers<[1], [0], [0], [1], [0, 0, 1, 1], [], []>} : vector<8x32xbf16>, vector<32x128xbf16>, vector<8x128xf32> -> vector<8x128xf32>
    %c0_4 = arith.constant 0 : index
    %c0_5 = arith.constant 0 : index
    %5 = vector.load %arg3[%c0_4, %c0_5] : memref<4x128xf32, #tpu.memory_space<vmem>>, vector<1x128xf32>
    %6 = vector.broadcast %5 : vector<1x128xf32> to vector<8x128xf32>
    %7 = arith.addf %4, %6 : vector<8x128xf32>
    %cst_6 = arith.constant 0.000000e+00 : f32
    %8 = vector.broadcast %cst_6 : f32 to vector<8x128xf32>
    %9 = arith.maximumf %7, %8 : vector<8x128xf32>
    %10 = arith.truncf %9 : vector<8x128xf32> to vector<8x128xbf16>
    %c1 = arith.constant 1 : index
    %c0_7 = arith.constant 0 : index
    %c0_8 = arith.constant 0 : index
    %11 = vector.load %arg2[%c1, %c0_7, %c0_8] : memref<4x128x128xbf16, #tpu.memory_space<vmem>>, vector<1x128x128xbf16>
    %12 = vector.shape_cast %11 : vector<1x128x128xbf16> to vector<128x128xbf16>
    %cst_9 = arith.constant dense<0.000000e+00> : vector<8x128xf32>
    %13 = tpu.matmul %10, %12, %cst_9 {dimension_numbers = #tpu.dot_dimension_numbers<[1], [0], [0], [1], [0, 0, 1, 1], [], []>} : vector<8x128xbf16>, vector<128x128xbf16>, vector<8x128xf32> -> vector<8x128xf32>
    %c1_10 = arith.constant 1 : index
    %c0_11 = arith.constant 0 : index
    %14 = vector.load %arg3[%c1_10, %c0_11] : memref<4x128xf32, #tpu.memory_space<vmem>>, vector<1x128xf32>
    %15 = vector.broadcast %14 : vector<1x128xf32> to vector<8x128xf32>
    %16 = arith.addf %13, %15 : vector<8x128xf32>
    %cst_12 = arith.constant 0.000000e+00 : f32
    %17 = vector.broadcast %cst_12 : f32 to vector<8x128xf32>
    %18 = arith.maximumf %16, %17 : vector<8x128xf32>
    %19 = arith.truncf %18 : vector<8x128xf32> to vector<8x128xbf16>
    %c2 = arith.constant 2 : index
    %c0_13 = arith.constant 0 : index
    %c0_14 = arith.constant 0 : index
    %20 = vector.load %arg2[%c2, %c0_13, %c0_14] : memref<4x128x128xbf16, #tpu.memory_space<vmem>>, vector<1x128x128xbf16>
    %21 = vector.shape_cast %20 : vector<1x128x128xbf16> to vector<128x128xbf16>
    %cst_15 = arith.constant dense<0.000000e+00> : vector<8x128xf32>
    %22 = tpu.matmul %19, %21, %cst_15 {dimension_numbers = #tpu.dot_dimension_numbers<[1], [0], [0], [1], [0, 0, 1, 1], [], []>} : vector<8x128xbf16>, vector<128x128xbf16>, vector<8x128xf32> -> vector<8x128xf32>
    %c2_16 = arith.constant 2 : index
    %c0_17 = arith.constant 0 : index
    %23 = vector.load %arg3[%c2_16, %c0_17] : memref<4x128xf32, #tpu.memory_space<vmem>>, vector<1x128xf32>
    %24 = vector.broadcast %23 : vector<1x128xf32> to vector<8x128xf32>
    %25 = arith.addf %22, %24 : vector<8x128xf32>
    %cst_18 = arith.constant 0.000000e+00 : f32
    %26 = vector.broadcast %cst_18 : f32 to vector<8x128xf32>
    %27 = arith.maximumf %25, %26 : vector<8x128xf32>
    %28 = arith.truncf %27 : vector<8x128xf32> to vector<8x128xbf16>
    %c3 = arith.constant 3 : index
    %c0_19 = arith.constant 0 : index
    %c0_20 = arith.constant 0 : index
    %29 = vector.load %arg2[%c3, %c0_19, %c0_20] : memref<4x128x128xbf16, #tpu.memory_space<vmem>>, vector<1x128x128xbf16>
    %30 = vector.shape_cast %29 : vector<1x128x128xbf16> to vector<128x128xbf16>
    %cst_21 = arith.constant dense<0.000000e+00> : vector<8x128xf32>
    %31 = tpu.matmul %28, %30, %cst_21 {dimension_numbers = #tpu.dot_dimension_numbers<[1], [0], [0], [1], [0, 0, 1, 1], [], []>} : vector<8x128xbf16>, vector<128x128xbf16>, vector<8x128xf32> -> vector<8x128xf32>
    %c3_22 = arith.constant 3 : index
    %c0_23 = arith.constant 0 : index
    %32 = vector.load %arg3[%c3_22, %c0_23] : memref<4x128xf32, #tpu.memory_space<vmem>>, vector<1x128xf32>
    %33 = vector.broadcast %32 : vector<1x128xf32> to vector<8x128xf32>
    %34 = arith.addf %31, %33 : vector<8x128xf32>
    %35 = vector.extract_strided_slice %34 {offsets = [0, 0], sizes = [8, 8], strides = [1, 1]} : vector<8x128xf32> to vector<8x8xf32>
    %c0_24 = arith.constant 0 : index
    %c0_25 = arith.constant 0 : index
    %36 = vector.load %arg4[%c0_24, %c0_25] : memref<8x8xf32, #tpu.memory_space<vmem>>, vector<8x8xf32>
    tpu.vector_store %arg4[%c0_24, %c0_25], %35 {strides = array<i32>} : memref<8x8xf32, #tpu.memory_space<vmem>>, vector<8x8xf32>,
    return
  }
  func.func @transform_0(%arg0: i32) -> (i32, i32) {
    %c0_i32 = arith.constant 0 : i32
    %c0_i32_0 = arith.constant 0 : i32
    return %arg0, %c0_i32 : i32, i32
  }
  func.func @transform_1(%arg0: i32) -> (i32, i32, i32) {
    %c0_i32 = arith.constant 0 : i32
    %c0_i32_0 = arith.constant 0 : i32
    %c0_i32_1 = arith.constant 0 : i32
    %c0_i32_2 = arith.constant 0 : i32
    return %c0_i32, %c0_i32_0, %c0_i32_1 : i32, i32, i32
  }
  func.func @transform_2(%arg0: i32) -> (i32, i32) {
    %c0_i32 = arith.constant 0 : i32
    %c0_i32_0 = arith.constant 0 : i32
    %c0_i32_1 = arith.constant 0 : i32
    return %c0_i32, %c0_i32_0 : i32, i32
  }
  func.func @transform_3(%arg0: i32) -> (i32, i32) {
    %c0_i32 = arith.constant 0 : i32
    %c0_i32_0 = arith.constant 0 : i32
    return %arg0, %c0_i32 : i32, i32
  }
}

</mosaic_0001>

<llo_original>
// kernel: tpu_custom_call.1
$region0: #{tpu_custom_call.1}
  #allocation0 [shape = 'u32[]', space=smem, size = 0x4, offset = 0x4, fixed_abs, tag = 'smem constant byte address 0x4 - core index']
  #allocation1 [shape = 'u32[144,128]{1,0:T(1,128)}', space=vmem, size = 0x12000, scoped, tag = 'internal scratch']
  %s0 = inlined_call_operand.hbm [shape: f32[8,32], index: 0, kind: input, shape index: {}]
  %s1 = inlined_call_operand.hbm [shape: bf16[4,128,128], index: 1, kind: input, shape index: {}]
  %s2 = inlined_call_operand.vmem [shape: f32[4,128], index: 2, kind: input, shape index: {}]
  %s3 = inlined_call_operand.hbm [shape: f32[8,8], index: 3, kind: output, shape index: {}]
  %s4 = sld [smem:[#allocation0]]
  $region30: #{tpu_custom_call.1} parent=0
    _
  %s6 = ssub.s32 1, %s4
  %s7 = scalar_select 0, %s6, %s4
  $region1: #{tpu_custom_call.1} parent=0
    #allocation2 [shape = 'u8[4096]{0}', space=vmem, size = 0x1000, scoped, tag = 'input window, operand 0, single buffered']
    #allocation3 [shape = 's32[1]{0}', space=sflag, size = 0x4, scoped, tag = 'scoped memory for tpu_custom_call.1']
    #allocation4 [shape = 's32[1]{0}', space=sflag, size = 0x4, scoped, tag = 'scoped memory for tpu_custom_call.1']
    #allocation5 [shape = 'u8[131072]{0}', space=vmem, size = 0x20000, scoped, tag = 'input window, operand 1, single buffered']
    #allocation6 [shape = 's32[1]{0}', space=sflag, size = 0x4, scoped, tag = 'scoped memory for tpu_custom_call.1']
    #allocation7 [shape = 'u8[4096]{0}', space=vmem, size = 0x1000, scoped, tag = 'output window, operand 0, single buffered']
    %8 = vsyncpa [#allocation3], 0
    %9 = vsyncpa [#allocation6], 0
    %10 = vsyncpa [#allocation4], 0
    // Predicated region
    $region2: #{tpu_custom_call.1} parent=1 // pred_check
      _
    $region3: #{tpu_custom_call.1} parent=1 // pred_check_branch
      %12 = sbr.rel (0) target = $region5
    $region4: #{tpu_custom_call.1} parent=1 // pred_region
      %s14 = ssub.s32 128, 128
      %15 = vsyncadd [#allocation3], %s14
      %s17 = sshll.u32 [#allocation2], 4
      %s18 = int_to_ptr.vmem [resolvable:$true] %s17
      %20 = dma.hbm_to_vmem [thread:$0]  %s0, 128, %s18, [#allocation3]
    $region5: #{tpu_custom_call.1} parent=1 // pred_fallthru
      _
    // Predicated region
    $region6: #{tpu_custom_call.1} parent=1 // pred_check
      _
    $region7: #{tpu_custom_call.1} parent=1 // pred_check_branch
      %22 = sbr.rel (0) target = $region9
    $region8: #{tpu_custom_call.1} parent=1 // pred_region
      %s24 = ssub.s32 4096, 4096
      %25 = vsyncadd [#allocation6], %s24
      %s26 = sshll.u32 [#allocation5], 4
      %s27 = int_to_ptr.vmem [resolvable:$true] %s26
      %32 = dma.hbm_to_vmem [thread:$0]  %s1, 4096, %s27, [#allocation6], 64, 64, 4
    $region9: #{tpu_custom_call.1} parent=1 // pred_fallthru
      _
    // Predicated region
    $region10: #{tpu_custom_call.1} parent=1 // pred_check
      _
    $region11: #{tpu_custom_call.1} parent=1 // pred_check_branch
      %34 = sbr.rel (0) target = $region13
    $region12: #{tpu_custom_call.1} parent=1 // pred_region
      _
    $region13: #{tpu_custom_call.1} parent=1 // pred_fallthru
      _
    // Predicated region
    $region14: #{tpu_custom_call.1} parent=1 // pred_check
      _
    $region15: #{tpu_custom_call.1} parent=1 // pred_check_branch
      %36 = sbr.rel (0) target = $region17
    $region16: #{tpu_custom_call.1} parent=1 // pred_region
      %37 = dma.done [#allocation3], 128
    $region17: #{tpu_custom_call.1} parent=1 // pred_fallthru
      _
    // Predicated region
    $region18: #{tpu_custom_call.1} parent=1 // pred_check
      _
    $region19: #{tpu_custom_call.1} parent=1 // pred_check_branch
      %39 = sbr.rel (0) target = $region21
    $region20: #{tpu_custom_call.1} parent=1 // pred_region
      %40 = dma.done [#allocation6], 4096
    $region21: #{tpu_custom_call.1} parent=1 // pred_fallthru
      _
    %v42 = vld [vmem:[#allocation2] sm:$0xff]
    %v43 = vpack.c.bf16 %v42, %v42
    %v44 = vld [vmem:[#allocation5] sm:$0xf]
    %v45 = vld [vmem:[#allocation5 + $0x4] sm:$0xf]
    %v46 = vld [vmem:[#allocation5 + $0x8] sm:$0xf]
    %v47 = vld [vmem:[#allocation5 + $0xc] sm:$0xf]
    %v48 = vld [vmem:[%s2] sm:$0x1]
    %v49 = vlaneseq
    %v50 = vshrl.u32 %v49, 7
    %v51 = vsub.s32 0, %v50
    %v52 = vrot.slane %v48, %v51
    %v57 = vunpack.c.l.b16 %v44
    %v58 = vunpack.c.l.b16 %v45
    %v59 = vunpack.c.l.b16 %v46
    %v60 = vunpack.c.l.b16 %v47
    %v61 = vpack.c.b16 %v58, %v57
    %v62 = vpack.c.b16 %v60, %v59
    %vm65 = vcmask 261120
    %v67 = vsel %vm65, %v43, 0
    %69 = vmatprep.subr.bf16.mxu0 0
    %70 = vmatpush1.bf16.msra.mxu0 %v61
    %71 = vmatprep.subr.bf16.mxu0 0
    %72 = vmatpush1.bf16.msra.mxu0 %v62
    %73 = vmatprep.subr.bf16.mxu0 0
    %74 = vmatpush1.bf16.msra.mxu0 0
    %75 = vmatprep.subr.bf16.mxu0 0
    %76 = vmatpush1.bf16.msra.mxu0 0
    %77 = vmatprep.subr.bf16.mxu0 0
    %78 = vmatpush1.bf16.msra.mxu0 0
    %79 = vmatprep.subr.bf16.mxu0 0
    %80 = vmatpush1.bf16.msra.mxu0 0
    %81 = vmatprep.subr.bf16.mxu0 0
    %82 = vmatpush1.bf16.msra.mxu0 0
    %83 = vmatprep.subr.bf16.mxu0 0
    %84 = vmatpush1.bf16.msra.mxu0 0
    %85 = vmatprep.subr.bf16.mxu0 0
    %86 = vmatpush1.bf16.msra.mxu0 0
    %87 = vmatprep.subr.bf16.mxu0 0
    %88 = vmatpush1.bf16.msra.mxu0 0
    %89 = vmatprep.subr.bf16.mxu0 0
    %90 = vmatpush1.bf16.msra.mxu0 0
    %91 = vmatprep.subr.bf16.mxu0 0
    %92 = vmatpush1.bf16.msra.mxu0 0
    %93 = vmatprep.subr.bf16.mxu0 0
    %94 = vmatpush1.bf16.msra.mxu0 0
    %95 = vmatprep.subr.bf16.mxu0 0
    %96 = vmatpush1.bf16.msra.mxu0 0
    %97 = vmatprep.subr.bf16.mxu0 0
    %98 = vmatpush1.bf16.msra.mxu0 0
    %99 = vmatprep.subr.bf16.mxu0 0
    %100 = vmatpush1.bf16.msra.mxu0 0
    %101 = vmatprep.mubr.bf16.mxu0 0
    %102 = vmatmul.mubr.bf16.gmra.mrb[0].mxu0 %v67
    %v103 = vpop.f32.mrb[0].mxu0
    %v104 = vadd.f32 %v52, %v103
    %v105 = vpop.f32.mrb[0].mxu0
    %v106 = vpop.f32.mrb[0].mxu0
    %v107 = vpop.f32.mrb[0].mxu0
    %108 = vdwg.mxu0
    %v109 = vmax.f32 %v104, 0.0
    %v110 = vpack.c.bf16 %v109, %v109
    %s111 = scalar_lea.vmem [#allocation5], 64
    %v112 = vld [vmem:[%s111] sm:$0xf]
    %v113 = vld [vmem:[%s111 + $0x4] sm:$0xf]
    %v114 = vld [vmem:[%s111 + $0x8] sm:$0xf]
    %v115 = vld [vmem:[%s111 + $0xc] sm:$0xf]
    %v116 = vld [vmem:[%s111 + $0x10] sm:$0xf]
    %v117 = vld [vmem:[%s111 + $0x14] sm:$0xf]
    %v118 = vld [vmem:[%s111 + $0x18] sm:$0xf]
    %v119 = vld [vmem:[%s111 + $0x1c] sm:$0xf]
    %v120 = vld [vmem:[%s111 + $0x20] sm:$0xf]
    %v121 = vld [vmem:[%s111 + $0x24] sm:$0xf]
    %v122 = vld [vmem:[%s111 + $0x28] sm:$0xf]
    %v123 = vld [vmem:[%s111 + $0x2c] sm:$0xf]
    %v124 = vld [vmem:[%s111 + $0x30] sm:$0xf]
    %v125 = vld [vmem:[%s111 + $0x34] sm:$0xf]
    %v126 = vld [vmem:[%s111 + $0x38] sm:$0xf]
    %v127 = vld [vmem:[%s111 + $0x3c] sm:$0xf]
    %v128 = vld [vmem:[%s2 + $0x1] sm:$0x1]
    %v129 = vlaneseq
    %v130 = vshrl.u32 %v129, 7
    %v131 = vsub.s32 0, %v130
    %v132 = vrot.slane %v128, %v131
    %v149 = vunpack.c.l.b16 %v112
    %v150 = vunpack.c.l.b16 %v113
    %v151 = vunpack.c.l.b16 %v114
    %v152 = vunpack.c.l.b16 %v115
    %v153 = vunpack.c.l.b16 %v116
    %v154 = vunpack.c.l.b16 %v117
    %v155 = vunpack.c.l.b16 %v118
    %v156 = vunpack.c.l.b16 %v119
    %v157 = vunpack.c.l.b16 %v120
    %v158 = vunpack.c.l.b16 %v121
    %v159 = vunpack.c.l.b16 %v122
    %v160 = vunpack.c.l.b16 %v123
    %v161 = vunpack.c.l.b16 %v124
    %v162 = vunpack.c.l.b16 %v125
    %v163 = vunpack.c.l.b16 %v126
    %v164 = vunpack.c.l.b16 %v127
    %v165 = vpack.c.b16 %v150, %v149
    %v166 = vpack.c.b16 %v152, %v151
    %v167 = vpack.c.b16 %v154, %v153
    %v168 = vpack.c.b16 %v156, %v155
    %v169 = vpack.c.b16 %v158, %v157
    %v170 = vpack.c.b16 %v160, %v159
    %v171 = vpack.c.b16 %v162, %v161
    %v172 = vpack.c.b16 %v164, %v163
    %181 = vmatprep.subr.bf16.mxu0 0
    %182 = vmatpush1.bf16.msra.mxu0 %v165
    %183 = vmatprep.subr.bf16.mxu0 0
    %184 = vmatpush1.bf16.msra.mxu0 %v166
    %185 = vmatprep.subr.bf16.mxu0 0
    %186 = vmatpush1.bf16.msra.mxu0 %v167
    %187 = vmatprep.subr.bf16.mxu0 0
    %188 = vmatpush1.bf16.msra.mxu0 %v168
    %189 = vmatprep.subr.bf16.mxu0 0
    %190 = vmatpush1.bf16.msra.mxu0 %v169
    %191 = vmatprep.subr.bf16.mxu0 0
    %192 = vmatpush1.bf16.msra.mxu0 %v170
    %193 = vmatprep.subr.bf16.mxu0 0
    %194 = vmatpush1.bf16.msra.mxu0 %v171
    %195 = vmatprep.subr.bf16.mxu0 0
    %196 = vmatpush1.bf16.msra.mxu0 %v172
    %197 = vmatprep.subr.bf16.mxu0 0
    %198 = vmatpush1.bf16.msra.mxu0 0
    %199 = vmatprep.subr.bf16.mxu0 0
    %200 = vmatpush1.bf16.msra.mxu0 0
    %201 = vmatprep.subr.bf16.mxu0 0
    %202 = vmatpush1.bf16.msra.mxu0 0
    %203 = vmatprep.subr.bf16.mxu0 0
    %204 = vmatpush1.bf16.msra.mxu0 0
    %205 = vmatprep.subr.bf16.mxu0 0
    %206 = vmatpush1.bf16.msra.mxu0 0
    %207 = vmatprep.subr.bf16.mxu0 0
    %208 = vmatpush1.bf16.msra.mxu0 0
    %209 = vmatprep.subr.bf16.mxu0 0
    %210 = vmatpush1.bf16.msra.mxu0 0
    %211 = vmatprep.subr.bf16.mxu0 0
    %212 = vmatpush1.bf16.msra.mxu0 0
    %213 = vmatprep.mubr.bf16.mxu0 0
    %214 = vmatmul.mubr.bf16.gmra.mrb[0].mxu0 %v110
    %v215 = vpop.f32.mrb[0].mxu0
    %v216 = vadd.f32 %v132, %v215
    %v217 = vpop.f32.mrb[0].mxu0
    %v218 = vpop.f32.mrb[0].mxu0
    %v219 = vpop.f32.mrb[0].mxu0
    %220 = vdwg.mxu0
    %v221 = vmax.f32 %v216, 0.0
    %v222 = vpack.c.bf16 %v221, %v221
    %s223 = scalar_lea.vmem [#allocation5], 128
    %v224 = vld [vmem:[%s223] sm:$0xf]
    %v225 = vld [vmem:[%s223 + $0x4] sm:$0xf]
    %v226 = vld [vmem:[%s223 + $0x8] sm:$0xf]
    %v227 = vld [vmem:[%s223 + $0xc] sm:$0xf]
    %v228 = vld [vmem:[%s223 + $0x10] sm:$0xf]
    %v229 = vld [vmem:[%s223 + $0x14] sm:$0xf]
    %v230 = vld [vmem:[%s223 + $0x18] sm:$0xf]
    %v231 = vld [vmem:[%s223 + $0x1c] sm:$0xf]
    %v232 = vld [vmem:[%s223 + $0x20] sm:$0xf]
    %v233 = vld [vmem:[%s223 + $0x24] sm:$0xf]
    %v234 = vld [vmem:[%s223 + $0x28] sm:$0xf]
    %v235 = vld [vmem:[%s223 + $0x2c] sm:$0xf]
    %v236 = vld [vmem:[%s223 + $0x30] sm:$0xf]
    %v237 = vld [vmem:[%s223 + $0x34] sm:$0xf]
    %v238 = vld [vmem:[%s223 + $0x38] sm:$0xf]
    %v239 = vld [vmem:[%s223 + $0x3c] sm:$0xf]
    %v240 = vld [vmem:[%s2 + $0x2] sm:$0x1]
    %v241 = vlaneseq
    %v242 = vshrl.u32 %v241, 7
    %v243 = vsub.s32 0, %v242
    %v244 = vrot.slane %v240, %v243
    %v261 = vunpack.c.l.b16 %v224
    %v262 = vunpack.c.l.b16 %v225
    %v263 = vunpack.c.l.b16 %v226
    %v264 = vunpack.c.l.b16 %v227
    %v265 = vunpack.c.l.b16 %v228
    %v266 = vunpack.c.l.b16 %v229
    %v267 = vunpack.c.l.b16 %v230
    %v268 = vunpack.c.l.b16 %v231
    %v269 = vunpack.c.l.b16 %v232
    %v270 = vunpack.c.l.b16 %v233
    %v271 = vunpack.c.l.b16 %v234
    %v272 = vunpack.c.l.b16 %v235
    %v273 = vunpack.c.l.b16 %v236
    %v274 = vunpack.c.l.b16 %v237
    %v275 = vunpack.c.l.b16 %v238
    %v276 = vunpack.c.l.b16 %v239
    %v277 = vpack.c.b16 %v262, %v261
    %v278 = vpack.c.b16 %v264, %v263
    %v279 = vpack.c.b16 %v266, %v265
    %v280 = vpack.c.b16 %v268, %v267
    %v281 = vpack.c.b16 %v270, %v269
    %v282 = vpack.c.b16 %v272, %v271
    %v283 = vpack.c.b16 %v274, %v273
    %v284 = vpack.c.b16 %v276, %v275
    %293 = vmatprep.subr.bf16.mxu0 0
    %294 = vmatpush1.bf16.msra.mxu0 %v277
    %295 = vmatprep.subr.bf16.mxu0 0
    %296 = vmatpush1.bf16.msra.mxu0 %v278
    %297 = vmatprep.subr.bf16.mxu0 0
    %298 = vmatpush1.bf16.msra.mxu0 %v279
    %299 = vmatprep.subr.bf16.mxu0 0
    %300 = vmatpush1.bf16.msra.mxu0 %v280
    %301 = vmatprep.subr.bf16.mxu0 0
    %302 = vmatpush1.bf16.msra.mxu0 %v281
    %303 = vmatprep.subr.bf16.mxu0 0
    %304 = vmatpush1.bf16.msra.mxu0 %v282
    %305 = vmatprep.subr.bf16.mxu0 0
    %306 = vmatpush1.bf16.msra.mxu0 %v283
    %307 = vmatprep.subr.bf16.mxu0 0
    %308 = vmatpush1.bf16.msra.mxu0 %v284
    %309 = vmatprep.subr.bf16.mxu0 0
    %310 = vmatpush1.bf16.msra.mxu0 0
    %311 = vmatprep.subr.bf16.mxu0 0
    %312 = vmatpush1.bf16.msra.mxu0 0
    %313 = vmatprep.subr.bf16.mxu0 0
    %314 = vmatpush1.bf16.msra.mxu0 0
    %315 = vmatprep.subr.bf16.mxu0 0
    %316 = vmatpush1.bf16.msra.mxu0 0
    %317 = vmatprep.subr.bf16.mxu0 0
    %318 = vmatpush1.bf16.msra.mxu0 0
    %319 = vmatprep.subr.bf16.mxu0 0
    %320 = vmatpush1.bf16.msra.mxu0 0
    %321 = vmatprep.subr.bf16.mxu0 0
    %322 = vmatpush1.bf16.msra.mxu0 0
    %323 = vmatprep.subr.bf16.mxu0 0
    %324 = vmatpush1.bf16.msra.mxu0 0
    %325 = vmatprep.mubr.bf16.mxu0 0
    %326 = vmatmul.mubr.bf16.gmra.mrb[0].mxu0 %v222
    %v327 = vpop.f32.mrb[0].mxu0
    %v328 = vadd.f32 %v244, %v327
    %v329 = vpop.f32.mrb[0].mxu0
    %v330 = vpop.f32.mrb[0].mxu0
    %v331 = vpop.f32.mrb[0].mxu0
    %332 = vdwg.mxu0
    %v333 = vmax.f32 %v328, 0.0
    %v334 = vpack.c.bf16 %v333, %v333
    %s335 = scalar_lea.vmem [#allocation5], 192
    %v336 = vld [vmem:[%s335] sm:$0xf]
    %v337 = vld [vmem:[%s335 + $0x4] sm:$0xf]
    %v338 = vld [vmem:[%s335 + $0x8] sm:$0xf]
    %v339 = vld [vmem:[%s335 + $0xc] sm:$0xf]
    %v340 = vld [vmem:[%s335 + $0x10] sm:$0xf]
    %v341 = vld [vmem:[%s335 + $0x14] sm:$0xf]
    %v342 = vld [vmem:[%s335 + $0x18] sm:$0xf]
    %v343 = vld [vmem:[%s335 + $0x1c] sm:$0xf]
    %v344 = vld [vmem:[%s335 + $0x20] sm:$0xf]
    %v345 = vld [vmem:[%s335 + $0x24] sm:$0xf]
    %v346 = vld [vmem:[%s335 + $0x28] sm:$0xf]
    %v347 = vld [vmem:[%s335 + $0x2c] sm:$0xf]
    %v348 = vld [vmem:[%s335 + $0x30] sm:$0xf]
    %v349 = vld [vmem:[%s335 + $0x34] sm:$0xf]
    %v350 = vld [vmem:[%s335 + $0x38] sm:$0xf]
    %v351 = vld [vmem:[%s335 + $0x3c] sm:$0xf]
    %v352 = vld [vmem:[%s2 + $0x3] sm:$0x1]
    %v353 = vlaneseq
    %v354 = vshrl.u32 %v353, 7
    %v355 = vsub.s32 0, %v354
    %v356 = vrot.slane %v352, %v355
    %v373 = vunpack.c.l.b16 %v336
    %v374 = vunpack.c.l.b16 %v337
    %v375 = vunpack.c.l.b16 %v338
    %v376 = vunpack.c.l.b16 %v339
    %v377 = vunpack.c.l.b16 %v340
    %v378 = vunpack.c.l.b16 %v341
    %v379 = vunpack.c.l.b16 %v342
    %v380 = vunpack.c.l.b16 %v343
    %v381 = vunpack.c.l.b16 %v344
    %v382 = vunpack.c.l.b16 %v345
    %v383 = vunpack.c.l.b16 %v346
    %v384 = vunpack.c.l.b16 %v347
    %v385 = vunpack.c.l.b16 %v348
    %v386 = vunpack.c.l.b16 %v349
    %v387 = vunpack.c.l.b16 %v350
    %v388 = vunpack.c.l.b16 %v351
    %v389 = vpack.c.b16 %v374, %v373
    %v390 = vpack.c.b16 %v376, %v375
    %v391 = vpack.c.b16 %v378, %v377
    %v392 = vpack.c.b16 %v380, %v379
    %v393 = vpack.c.b16 %v382, %v381
    %v394 = vpack.c.b16 %v384, %v383
    %v395 = vpack.c.b16 %v386, %v385
    %v396 = vpack.c.b16 %v388, %v387
    %405 = vmatprep.subr.bf16.mxu0 0
    %406 = vmatpush1.bf16.msra.mxu0 %v389
    %407 = vmatprep.subr.bf16.mxu0 0
    %408 = vmatpush1.bf16.msra.mxu0 %v390
    %409 = vmatprep.subr.bf16.mxu0 0
    %410 = vmatpush1.bf16.msra.mxu0 %v391
    %411 = vmatprep.subr.bf16.mxu0 0
    %412 = vmatpush1.bf16.msra.mxu0 %v392
    %413 = vmatprep.subr.bf16.mxu0 0
    %414 = vmatpush1.bf16.msra.mxu0 %v393
    %415 = vmatprep.subr.bf16.mxu0 0
    %416 = vmatpush1.bf16.msra.mxu0 %v394
    %417 = vmatprep.subr.bf16.mxu0 0
    %418 = vmatpush1.bf16.msra.mxu0 %v395
    %419 = vmatprep.subr.bf16.mxu0 0
    %420 = vmatpush1.bf16.msra.mxu0 %v396
    %421 = vmatprep.subr.bf16.mxu0 0
    %422 = vmatpush1.bf16.msra.mxu0 0
    %423 = vmatprep.subr.bf16.mxu0 0
    %424 = vmatpush1.bf16.msra.mxu0 0
    %425 = vmatprep.subr.bf16.mxu0 0
    %426 = vmatpush1.bf16.msra.mxu0 0
    %427 = vmatprep.subr.bf16.mxu0 0
    %428 = vmatpush1.bf16.msra.mxu0 0
    %429 = vmatprep.subr.bf16.mxu0 0
    %430 = vmatpush1.bf16.msra.mxu0 0
    %431 = vmatprep.subr.bf16.mxu0 0
    %432 = vmatpush1.bf16.msra.mxu0 0
    %433 = vmatprep.subr.bf16.mxu0 0
    %434 = vmatpush1.bf16.msra.mxu0 0
    %435 = vmatprep.subr.bf16.mxu0 0
    %436 = vmatpush1.bf16.msra.mxu0 0
    %437 = vmatprep.mubr.bf16.mxu0 0
    %438 = vmatmul.mubr.bf16.gmra.mrb[0].mxu0 %v334
    %v439 = vpop.f32.mrb[0].mxu0
    %v440 = vadd.f32 %v356, %v439
    %v441 = vpop.f32.mrb[0].mxu0
    %v442 = vpop.f32.mrb[0].mxu0
    %v443 = vpop.f32.mrb[0].mxu0
    %444 = vdwg.mxu0
    %vm445 = vcmask 64512
    %446 = vst.msk [vmem:[#allocation7] sm:$0xff] %vm445, %v440
    // Predicated region
    $region22: #{tpu_custom_call.1} parent=1 // pred_check
      _
    $region23: #{tpu_custom_call.1} parent=1 // pred_check_branch
      %448 = sbr.rel (0) target = $region25
    $region24: #{tpu_custom_call.1} parent=1 // pred_region
      %s450 = ssub.s32 128, 128
      %451 = vsyncadd [#allocation4], %s450
      %s453 = sshll.u32 [#allocation7], 4
      %s454 = int_to_ptr.vmem [resolvable:$true] %s453
      %456 = dma.vmem_to_hbm [thread:$0]  %s454, 128, %s3, [#allocation4]
    $region25: #{tpu_custom_call.1} parent=1 // pred_fallthru
      _
    // Predicated region
    $region26: #{tpu_custom_call.1} parent=1 // pred_check
      _
    $region27: #{tpu_custom_call.1} parent=1 // pred_check_branch
      %458 = sbr.rel (0) target = $region29
    $region28: #{tpu_custom_call.1} parent=1 // pred_region
      %459 = dma.done [#allocation4], 128
    $region29: #{tpu_custom_call.1} parent=1 // pred_fallthru
      _
    %460 = vsyncpa [#allocation3], 1
    %461 = vsyncpa [#allocation6], 1
    %462 = vsyncpa [#allocation4], 1

</llo_original>
